<compile_context>
chip_gen: v7x
topology: tpu7x:2x2x1
jax: 0.10.0
libtpu: 0.0.40
codegen_flags: <defaults>
</compile_context>

<pallas_src>
import functools

import jax
import jax.numpy as jnp
from jax.experimental import pallas as pl
from jax.experimental.pallas import tpu as pltpu


def _conv_stats_kernel(x_ref, xh_ref, w_ref, y_ref, st_ref, acc_ref,
                       *, wo, cin4, cout):
    """Pass 1: stride-2 4x4 conv as 4 accumulating matmuls + per-tile BN stats."""
    th = x_ref.shape[1]
    m = th * wo

    xa = x_ref[0]                                  # [Th, Wp, 4*Cin]  bf16
    xh = xh_ref[0]                                 # [1,  Wp, 4*Cin]  bf16 (halo row)
    # Per-tap K-slices of the weight (K ordered (dr, dc, r, c, ci) in the wrapper).
    w00 = w_ref[0 * cin4:1 * cin4, :]
    w01 = w_ref[1 * cin4:2 * cin4, :]
    w10 = w_ref[2 * cin4:3 * cin4, :]
    w11 = w_ref[3 * cin4:4 * cin4, :]

    # dr = 0 taps: every output row in the tile uses main-block rows 0..Th-1.
    a0 = xa[:, 0:wo, :].reshape(m, cin4)
    a1 = xa[:, 1:wo + 1, :].reshape(m, cin4)
    acc_ref[...] = (jnp.dot(a0, w00, preferred_element_type=jnp.float32) +
                    jnp.dot(a1, w01, preferred_element_type=jnp.float32))

    # dr = 1 taps: output rows 0..Th-2 use main-block rows 1..Th-1; the last output
    # row uses the prefetched halo row -> no input-tile copy is ever built.
    if th > 1:
        mf = (th - 1) * wo
        b0 = xa[1:th, 0:wo, :].reshape(mf, cin4)
        b1 = xa[1:th, 1:wo + 1, :].reshape(mf, cin4)
        acc_ref[0:mf, :] += (jnp.dot(b0, w10, preferred_element_type=jnp.float32) +
                             jnp.dot(b1, w11, preferred_element_type=jnp.float32))
    h0 = xh[:, 0:wo, :].reshape(wo, cin4)
    h1 = xh[:, 1:wo + 1, :].reshape(wo, cin4)
    acc_ref[(th - 1) * wo:m, :] += (
        jnp.dot(h0, w10, preferred_element_type=jnp.float32) +
        jnp.dot(h1, w11, preferred_element_type=jnp.float32))

    yf = acc_ref[...]                              # [Th*Wo, Cout]  f32

    # Per-channel partial BN statistics (each tile owns its own stats block, so
    # there is no cross-iteration accumulation and both grid axes stay parallel).
    s0 = jnp.sum(yf, axis=0, keepdims=True)        # [1, Cout]
    s1 = jnp.sum(yf * yf, axis=0, keepdims=True)   # [1, Cout]
    st_ref[0, 0] = jnp.concatenate([s0, s1], axis=0)   # [2, Cout]

    # bf16 inter-pass intermediate; only a leading-dim reshape (no lane relayout).
    y_ref[0] = yf.reshape(th, wo, cout).astype(y_ref.dtype)


def _bn_lrelu_kernel(y_ref, sc_ref, sh_ref, o_ref, *, slope):
    """Pass 2: y*scale + shift -> LeakyReLU; pure element-wise on blocked tiles."""
    t = y_ref[0].astype(jnp.float32) * sc_ref[...] + sh_ref[...]
    o_ref[0] = jnp.maximum(t, slope * t)


def _footprint_bytes(th, wo, cin4, cout):
    """Rough per-grid-step VMEM footprint of pass 1 (double-buffered blocks)."""
    wp = wo + 1
    x_blk = 2 * th * wp * cin4 * 2          # main input block, 2 buffers, bf16
    h_blk = 2 * wp * cin4 * 2               # halo row block
    w_blk = 2 * 4 * cin4 * cout * 2         # weight (constant block, 2 buffers)
    y_blk = 2 * th * wo * cout * 2          # bf16 intermediate output block
    st_blk = 2 * 2 * cout * 4               # stats block
    acc = th * wo * cout * 4                # f32 scratch accumulator
    tmp = 2 * th * wo * cin4 * 2 + th * wo * cout * 4   # lhs slices + f32 temps
    return x_blk + h_blk + w_blk + y_blk + st_blk + acc + tmp


def _choose_row_tile(ho, wo, cin4, cout, budget_bytes=10 << 20):
    """Largest divisor of Ho whose per-tile footprint fits the VMEM budget."""
    for th in sorted((d for d in range(1, ho + 1) if ho % d == 0), reverse=True):
        if 1.5 * _footprint_bytes(th, wo, cin4, cout) <= budget_bytes:
            return th
    return 1


def unet_down(x, weight, gamma, beta, eps=0.8, negative_slope=0.2, nchw_output=True):
    """x: [N, Cin, H, W] (NCHW); weight: [Cout, Cin, 4, 4] (PyTorch Conv2d layout).
    Returns [N, Cout, H/2, W/2] NCHW (or [N, H/2, W/2, Cout] if nchw_output=False),
    matching UNetDown.forward in training mode (batch statistics)."""
    N, cin, H, W = x.shape
    cout = weight.shape[0]
    assert H % 2 == 0 and W % 2 == 0, "even spatial dims expected for k=4, s=2, p=1"
    Ho, Wo = H // 2, W // 2
    Hp, Wp = Ho + 1, Wo + 1
    cin4, k16 = 4 * cin, 16 * cin

    Th = _choose_row_tile(Ho, Wo, cin4, cout)
    nH = Ho // Th

    # ---- wrapper-side layout plumbing (no compute) --------------------------
    # Cast to bf16 first so the pad/transpose/patchify chain never writes f32.
    xb = x.astype(jnp.bfloat16)
    x_nhwc = jnp.transpose(xb, (0, 2, 3, 1))
    x_pad = jnp.pad(x_nhwc, ((0, 0), (1, 1), (1, 1), (0, 0)))       # [N, H+2, W+2, Cin]
    xp = (x_pad.reshape(N, Hp, 2, Wp, 2, cin)
               .transpose(0, 1, 3, 2, 4, 5)
               .reshape(N, Hp, Wp, cin4))                            # [N, Hp, Wp, 4*Cin]

    # Weight [Cout,Cin,4,4] -> [16*Cin, Cout], K ordered (dr, dc, r, c, ci) so the
    # per-tap K-slices in the kernel line up with xp's lane layout.
    w6 = jnp.transpose(weight, (2, 3, 1, 0)).reshape(2, 2, 2, 2, cin, cout)
    w_full = (jnp.transpose(w6, (0, 2, 1, 3, 4, 5))
                 .reshape(k16, cout)
                 .astype(jnp.bfloat16))

    est = _footprint_bytes(Th, Wo, cin4, cout)
    params = pltpu.CompilerParams(
        dimension_semantics=("parallel", "parallel"),
        vmem_limit_bytes=int(min(48 << 20, max(32 << 20, 2 * est))))

    # ---- pass 1: conv (4 accumulating matmuls) + per-tile BN partial stats ---
    y_k, stats = pl.pallas_call(
        functools.partial(_conv_stats_kernel, wo=Wo, cin4=cin4, cout=cout),
        grid=(N, nH),
        in_specs=[
            pl.BlockSpec((1, Th, Wp, cin4), lambda n, i: (n, i, 0, 0)),
            # +1 halo row of the SAME array (block size 1 on H => block idx == row).
            pl.BlockSpec((1, 1, Wp, cin4), lambda n, i: (n, (i + 1) * Th, 0, 0)),
            pl.BlockSpec((k16, cout), lambda n, i: (0, 0)),
        ],
        out_specs=(
            pl.BlockSpec((1, Th, Wo, cout), lambda n, i: (n, i, 0, 0)),
            pl.BlockSpec((1, 1, 2, cout), lambda n, i: (n, i, 0, 0)),
        ),
        out_shape=(
            jax.ShapeDtypeStruct((N, Ho, Wo, cout), jnp.bfloat16),
            jax.ShapeDtypeStruct((N, nH, 2, cout), jnp.float32),
        ),
        scratch_shapes=[pltpu.VMEM((Th * Wo, cout), jnp.float32)],
        compiler_params=params,
    )(xp, xp, w_full)

    # ---- BN finalize (tiny per-channel math, plain JAX, f32) -----------------
    ssum = jnp.sum(stats[:, :, 0, :], axis=(0, 1))
    ssq = jnp.sum(stats[:, :, 1, :], axis=(0, 1))
    cnt = float(N * Ho * Wo)
    mean = ssum / cnt
    # E[y^2]-E[y]^2 clamped at 0; eps=0.8 dominates any residual cancellation loss.
    var = jnp.maximum(ssq / cnt - mean * mean, 0.0)
    scale = gamma.astype(jnp.float32) * jax.lax.rsqrt(var + eps)
    shift = beta.astype(jnp.float32) - mean * scale
    scale_row = scale.reshape(1, cout)
    shift_row = shift.reshape(1, cout)

    # ---- pass 2: normalize + LeakyReLU (element-wise, blocked like pass 1) ---
    out_nhwc = pl.pallas_call(
        functools.partial(_bn_lrelu_kernel, slope=negative_slope),
        grid=(N, nH),
        in_specs=[
            pl.BlockSpec((1, Th, Wo, cout), lambda n, i: (n, i, 0, 0)),
            pl.BlockSpec((1, cout), lambda n, i: (0, 0)),
            pl.BlockSpec((1, cout), lambda n, i: (0, 0)),
        ],
        out_specs=pl.BlockSpec((1, Th, Wo, cout), lambda n, i: (n, i, 0, 0)),
        out_shape=jax.ShapeDtypeStruct((N, Ho, Wo, cout), jnp.float32),
        compiler_params=params,
    )(y_k, scale_row, shift_row)

    if not nchw_output:
        return out_nhwc          # lane-friendly layout, skips the NCHW round trip
    return jnp.transpose(out_nhwc, (0, 3, 1, 2))


def unet_down_ref(x, weight, gamma, beta, eps=0.8, negative_slope=0.2):
    """Pure-JAX reference mirroring the PyTorch forward (training-mode BN)."""
    y = jax.lax.conv_general_dilated(
        x, weight, window_strides=(2, 2), padding=((1, 1), (1, 1)),
        dimension_numbers=("NCHW", "OIHW", "NCHW"))
    mean = jnp.mean(y, axis=(0, 2, 3), keepdims=True)
    var = jnp.mean((y - mean) ** 2, axis=(0, 2, 3), keepdims=True)
    yn = (y - mean) * jax.lax.rsqrt(var + eps)
    yn = yn * gamma.reshape(1, -1, 1, 1) + beta.reshape(1, -1, 1, 1)
    return jnp.where(yn > 0, yn, negative_slope * yn)


if __name__ == "__main__":
    key = jax.random.PRNGKey(0)
    k1, k2, k3, k4 = jax.random.split(key, 4)

    N, Cin, H, W = 2, 4, 16, 16     # in_size = 4
    Cout = 8                        # out_size = 8

    x = jax.random.normal(k1, (N, Cin, H, W), jnp.float32)
    weight = 0.1 * jax.random.normal(k2, (Cout, Cin, 4, 4), jnp.float32)  # Conv2d weight
    gamma = 1.0 + 0.1 * jax.random.normal(k3, (Cout,), jnp.float32)       # BN weight
    beta = 0.1 * jax.random.normal(k4, (Cout,), jnp.float32)              # BN bias

    out = jax.block_until_ready(unet_down(x, weight, gamma, beta))
    ref = unet_down_ref(x, weight, gamma, beta)

    assert out.shape == (N, Cout, H // 2, W // 2), out.shape
    max_err = float(jnp.max(jnp.abs(out - ref)))
    assert max_err < 3e-2, f"max abs error too large: {max_err}"
    # TODO(synk): BatchNorm running_mean/running_var buffer updates (training-state
    # side effect of the module) are not modeled; only the returned tensor is produced.
    print("KERNEL_OK")
</pallas_src>

<mosaic_0001>
module attributes {stable_mosaic.version = 11 : i64} {
  func.func @_conv_stats_kernel(%arg0: i32, %arg1: i32, %arg2: memref<1x8x9x16xbf16, #tpu.memory_space<vmem>>, %arg3: memref<1x1x9x16xbf16, #tpu.memory_space<vmem>>, %arg4: memref<64x8xbf16, #tpu.memory_space<vmem>>, %arg5: memref<1x8x8x8xbf16, #tpu.memory_space<vmem>>, %arg6: memref<1x1x2x8xf32, #tpu.memory_space<vmem>>, %arg7: memref<64x8xf32, #tpu.memory_space<vmem>>) attributes {dimension_semantics = [#tpu.dimension_semantics<parallel>, #tpu.dimension_semantics<parallel>], iteration_bounds = array<i64: 2, 1>, scalar_prefetch = 0 : i64, scratch_operands = 1 : i64, tpu.core_type = #tpu.core_type<tc>, window_params = [{transform_indices = @transform_0, window_bounds = array<i64: 1, 8, 9, 16>}, {transform_indices = @transform_1, window_bounds = array<i64: 1, 1, 9, 16>}, {pipeline_mode = #tpu.pipeline_mode<synchronous>, transform_indices = @transform_2, window_bounds = array<i64: 64, 8>}, {transform_indices = @transform_3, window_bounds = array<i64: 1, 8, 8, 8>}, {transform_indices = @transform_4, window_bounds = array<i64: 1, 1, 2, 8>}]} {
    %c0 = arith.constant 0 : index
    %c0_0 = arith.constant 0 : index
    %c0_1 = arith.constant 0 : index
    %c0_2 = arith.constant 0 : index
    %0 = vector.load %arg2[%c0, %c0_0, %c0_1, %c0_2] : memref<1x8x9x16xbf16, #tpu.memory_space<vmem>>, vector<1x8x9x16xbf16>
    %1 = vector.shape_cast %0 : vector<1x8x9x16xbf16> to vector<8x9x16xbf16>
    %c0_3 = arith.constant 0 : index
    %c0_4 = arith.constant 0 : index
    %c0_5 = arith.constant 0 : index
    %c0_6 = arith.constant 0 : index
    %2 = vector.load %arg3[%c0_3, %c0_4, %c0_5, %c0_6] : memref<1x1x9x16xbf16, #tpu.memory_space<vmem>>, vector<1x1x9x16xbf16>
    %3 = vector.shape_cast %2 : vector<1x1x9x16xbf16> to vector<1x9x16xbf16>
    %c0_7 = arith.constant 0 : index
    %c0_8 = arith.constant 0 : index
    %4 = vector.load %arg4[%c0_7, %c0_8] : memref<64x8xbf16, #tpu.memory_space<vmem>>, vector<16x8xbf16>
    %c16 = arith.constant 16 : index
    %c0_9 = arith.constant 0 : index
    %5 = vector.load %arg4[%c16, %c0_9] : memref<64x8xbf16, #tpu.memory_space<vmem>>, vector<16x8xbf16>
    %c32 = arith.constant 32 : index
    %c0_10 = arith.constant 0 : index
    %6 = vector.load %arg4[%c32, %c0_10] : memref<64x8xbf16, #tpu.memory_space<vmem>>, vector<16x8xbf16>
    %c48 = arith.constant 48 : index
    %c0_11 = arith.constant 0 : index
    %7 = vector.load %arg4[%c48, %c0_11] : memref<64x8xbf16, #tpu.memory_space<vmem>>, vector<16x8xbf16>
    %8 = vector.extract_strided_slice %1 {offsets = [0, 0, 0], sizes = [8, 8, 16], strides = [1, 1, 1]} : vector<8x9x16xbf16> to vector<8x8x16xbf16>
    %9 = vector.shape_cast %8 : vector<8x8x16xbf16> to vector<64x16xbf16>
    %10 = vector.extract_strided_slice %1 {offsets = [0, 1, 0], sizes = [8, 8, 16], strides = [1, 1, 1]} : vector<8x9x16xbf16> to vector<8x8x16xbf16>
    %11 = vector.shape_cast %10 : vector<8x8x16xbf16> to vector<64x16xbf16>
    %cst = arith.constant dense<0.000000e+00> : vector<64x8xf32>
    %12 = tpu.matmul %9, %4, %cst {dimension_numbers = #tpu.dot_dimension_numbers<[1], [0], [0], [1], [0, 0, 1, 1], [], []>} : vector<64x16xbf16>, vector<16x8xbf16>, vector<64x8xf32> -> vector<64x8xf32>
    %cst_12 = arith.constant dense<0.000000e+00> : vector<64x8xf32>
    %13 = tpu.matmul %11, %5, %cst_12 {dimension_numbers = #tpu.dot_dimension_numbers<[1], [0], [0], [1], [0, 0, 1, 1], [], []>} : vector<64x16xbf16>, vector<16x8xbf16>, vector<64x8xf32> -> vector<64x8xf32>
    %14 = arith.addf %12, %13 : vector<64x8xf32>
    %c0_13 = arith.constant 0 : index
    %c0_14 = arith.constant 0 : index
    %15 = vector.load %arg7[%c0_13, %c0_14] : memref<64x8xf32, #tpu.memory_space<vmem>>, vector<64x8xf32>
    tpu.vector_store %arg7[%c0_13, %c0_14], %14 {strides = array<i32>} : memref<64x8xf32, #tpu.memory_space<vmem>>, vector<64x8xf32>,
    %16 = vector.extract_strided_slice %1 {offsets = [1, 0, 0], sizes = [7, 8, 16], strides = [1, 1, 1]} : vector<8x9x16xbf16> to vector<7x8x16xbf16>
    %17 = vector.shape_cast %16 : vector<7x8x16xbf16> to vector<56x16xbf16>
    %18 = vector.extract_strided_slice %1 {offsets = [1, 1, 0], sizes = [7, 8, 16], strides = [1, 1, 1]} : vector<8x9x16xbf16> to vector<7x8x16xbf16>
    %19 = vector.shape_cast %18 : vector<7x8x16xbf16> to vector<56x16xbf16>
    %c0_15 = arith.constant 0 : index
    %c0_16 = arith.constant 0 : index
    %20 = vector.load %arg7[%c0_15, %c0_16] : memref<64x8xf32, #tpu.memory_space<vmem>>, vector<56x8xf32>
    %cst_17 = arith.constant dense<0.000000e+00> : vector<56x8xf32>
    %21 = tpu.matmul %17, %6, %cst_17 {dimension_numbers = #tpu.dot_dimension_numbers<[1], [0], [0], [1], [0, 0, 1, 1], [], []>} : vector<56x16xbf16>, vector<16x8xbf16>, vector<56x8xf32> -> vector<56x8xf32>
    %cst_18 = arith.constant dense<0.000000e+00> : vector<56x8xf32>
    %22 = tpu.matmul %19, %7, %cst_18 {dimension_numbers = #tpu.dot_dimension_numbers<[1], [0], [0], [1], [0, 0, 1, 1], [], []>} : vector<56x16xbf16>, vector<16x8xbf16>, vector<56x8xf32> -> vector<56x8xf32>
    %23 = arith.addf %21, %22 : vector<56x8xf32>
    %24 = arith.addf %20, %23 : vector<56x8xf32>
    %c0_19 = arith.constant 0 : index
    %c0_20 = arith.constant 0 : index
    %25 = vector.load %arg7[%c0_19, %c0_20] : memref<64x8xf32, #tpu.memory_space<vmem>>, vector<56x8xf32>
    tpu.vector_store %arg7[%c0_19, %c0_20], %24 {strides = array<i32>} : memref<64x8xf32, #tpu.memory_space<vmem>>, vector<56x8xf32>,
    %26 = vector.extract_strided_slice %3 {offsets = [0, 0, 0], sizes = [1, 8, 16], strides = [1, 1, 1]} : vector<1x9x16xbf16> to vector<1x8x16xbf16>
    %27 = vector.shape_cast %26 : vector<1x8x16xbf16> to vector<8x16xbf16>
    %28 = vector.extract_strided_slice %3 {offsets = [0, 1, 0], sizes = [1, 8, 16], strides = [1, 1, 1]} : vector<1x9x16xbf16> to vector<1x8x16xbf16>
    %29 = vector.shape_cast %28 : vector<1x8x16xbf16> to vector<8x16xbf16>
    %c56 = arith.constant 56 : index
    %c0_21 = arith.constant 0 : index
    %30 = vector.load %arg7[%c56, %c0_21] : memref<64x8xf32, #tpu.memory_space<vmem>>, vector<8x8xf32>
    %cst_22 = arith.constant dense<0.000000e+00> : vector<8x8xf32>
    %31 = tpu.matmul %27, %6, %cst_22 {dimension_numbers = #tpu.dot_dimension_numbers<[1], [0], [0], [1], [0, 0, 1, 1], [], []>} : vector<8x16xbf16>, vector<16x8xbf16>, vector<8x8xf32> -> vector<8x8xf32>
    %cst_23 = arith.constant dense<0.000000e+00> : vector<8x8xf32>
    %32 = tpu.matmul %29, %7, %cst_23 {dimension_numbers = #tpu.dot_dimension_numbers<[1], [0], [0], [1], [0, 0, 1, 1], [], []>} : vector<8x16xbf16>, vector<16x8xbf16>, vector<8x8xf32> -> vector<8x8xf32>
    %33 = arith.addf %31, %32 : vector<8x8xf32>
    %34 = arith.addf %30, %33 : vector<8x8xf32>
    %c56_24 = arith.constant 56 : index
    %c0_25 = arith.constant 0 : index
    %35 = vector.load %arg7[%c56_24, %c0_25] : memref<64x8xf32, #tpu.memory_space<vmem>>, vector<8x8xf32>
    tpu.vector_store %arg7[%c56_24, %c0_25], %34 {strides = array<i32>} : memref<64x8xf32, #tpu.memory_space<vmem>>, vector<8x8xf32>,
    %c0_26 = arith.constant 0 : index
    %c0_27 = arith.constant 0 : index
    %36 = vector.load %arg7[%c0_26, %c0_27] : memref<64x8xf32, #tpu.memory_space<vmem>>, vector<64x8xf32>
    %cst_28 = arith.constant dense<0.000000e+00> : vector<8xf32>
    %37 = vector.multi_reduction <add>, %36, %cst_28 [0] : vector<64x8xf32> to vector<8xf32>
    %38 = vector.shape_cast %37 : vector<8xf32> to vector<1x8xf32>
    %39 = arith.mulf %36, %36 : vector<64x8xf32>
    %cst_29 = arith.constant dense<0.000000e+00> : vector<8xf32>
    %40 = vector.multi_reduction <add>, %39, %cst_29 [0] : vector<64x8xf32> to vector<8xf32>
    %41 = vector.shape_cast %40 : vector<8xf32> to vector<1x8xf32>
    %42 = tpu.concatenate %38, %41 in 0 : vector<1x8xf32>, vector<1x8xf32> -> vector<2x8xf32>
    %c0_30 = arith.constant 0 : index
    %c0_31 = arith.constant 0 : index
    %c0_32 = arith.constant 0 : index
    %c0_33 = arith.constant 0 : index
    %43 = vector.load %arg6[%c0_30, %c0_31, %c0_32, %c0_33] : memref<1x1x2x8xf32, #tpu.memory_space<vmem>>, vector<1x1x2x8xf32>
    %44 = vector.shape_cast %43 : vector<1x1x2x8xf32> to vector<2x8xf32>
    %45 = vector.shape_cast %42 : vector<2x8xf32> to vector<1x1x2x8xf32>
    tpu.vector_store %arg6[%c0_30, %c0_31, %c0_32, %c0_33], %45 {strides = array<i32>} : memref<1x1x2x8xf32, #tpu.memory_space<vmem>>, vector<1x1x2x8xf32>,
    %46 = vector.shape_cast %36 : vector<64x8xf32> to vector<8x8x8xf32>
    %47 = arith.truncf %46 : vector<8x8x8xf32> to vector<8x8x8xbf16>
    %c0_34 = arith.constant 0 : index
    %c0_35 = arith.constant 0 : index
    %c0_36 = arith.constant 0 : index
    %c0_37 = arith.constant 0 : index
    %48 = vector.load %arg5[%c0_34, %c0_35, %c0_36, %c0_37] : memref<1x8x8x8xbf16, #tpu.memory_space<vmem>>, vector<1x8x8x8xbf16>
    %49 = vector.shape_cast %48 : vector<1x8x8x8xbf16> to vector<8x8x8xbf16>
    %50 = vector.shape_cast %47 : vector<8x8x8xbf16> to vector<1x8x8x8xbf16>
    tpu.vector_store %arg5[%c0_34, %c0_35, %c0_36, %c0_37], %50 {strides = array<i32>} : memref<1x8x8x8xbf16, #tpu.memory_space<vmem>>, vector<1x8x8x8xbf16>,
    return
  }
  func.func @transform_0(%arg0: i32, %arg1: i32) -> (i32, i32, i32, i32) {
    %c0_i32 = arith.constant 0 : i32
    %c0_i32_0 = arith.constant 0 : i32
    %c0_i32_1 = arith.constant 0 : i32
    return %arg0, %arg1, %c0_i32, %c0_i32_0 : i32, i32, i32, i32
  }
  func.func @transform_1(%arg0: i32, %arg1: i32) -> (i32, i32, i32, i32) {
    %c1_i32 = arith.constant 1 : i32
    %0 = arith.addi %arg1, %c1_i32 : i32
    %c8_i32 = arith.constant 8 : i32
    %1 = arith.muli %0, %c8_i32 : i32
    %c0_i32 = arith.constant 0 : i32
    %c0_i32_0 = arith.constant 0 : i32
    %c0_i32_1 = arith.constant 0 : i32
    return %arg0, %1, %c0_i32, %c0_i32_0 : i32, i32, i32, i32
  }
  func.func @transform_2(%arg0: i32, %arg1: i32) -> (i32, i32) {
    %c0_i32 = arith.constant 0 : i32
    %c0_i32_0 = arith.constant 0 : i32
    %c0_i32_1 = arith.constant 0 : i32
    return %c0_i32, %c0_i32_0 : i32, i32
  }
  func.func @transform_3(%arg0: i32, %arg1: i32) -> (i32, i32, i32, i32) {
    %c0_i32 = arith.constant 0 : i32
    %c0_i32_0 = arith.constant 0 : i32
    %c0_i32_1 = arith.constant 0 : i32
    return %arg0, %arg1, %c0_i32, %c0_i32_0 : i32, i32, i32, i32
  }
  func.func @transform_4(%arg0: i32, %arg1: i32) -> (i32, i32, i32, i32) {
    %c0_i32 = arith.constant 0 : i32
    %c0_i32_0 = arith.constant 0 : i32
    %c0_i32_1 = arith.constant 0 : i32
    return %arg0, %arg1, %c0_i32, %c0_i32_0 : i32, i32, i32, i32
  }
}

</mosaic_0001>

<llo_original>
// kernel: tpu_custom_call.1
$region0: #{tpu_custom_call.1}
  #allocation0 [shape = 'u32[]', space=smem, size = 0x4, offset = 0x4, fixed_abs, tag = 'smem constant byte address 0x4 - core index']
  #allocation1 [shape = 'u32[144,128]{1,0:T(1,128)}', space=vmem, size = 0x12000, scoped, tag = 'internal scratch']
  #allocation2 [shape = 'f32[64,8]{1,0:T(8,128)}', space=vmem, size = 0x8000, scoped, tag = 'scratch operand']
  %s0 = inlined_call_operand.vmem [shape: bf16[2,9,9,16], index: 0, kind: input, shape index: {}]
  %s1 = inlined_call_operand.vmem [shape: bf16[2,9,9,16], index: 1, kind: input, shape index: {}]
  %s2 = inlined_call_operand.vmem [shape: bf16[64,8], index: 2, kind: input, shape index: {}]
  %s3 = inlined_call_operand.hbm [shape: bf16[2,8,8,8], index: 3, kind: output, shape index: {0}]
  %s4 = inlined_call_operand.hbm [shape: f32[2,1,2,8], index: 4, kind: output, shape index: {1}]
  %5 = xla_tuple %s3, %s4
  %s6 = sld [smem:[#allocation0]]
  $region53: #{tpu_custom_call.1} parent=0
    _
  %s8 = ssub.s32 1, %s6
  %s9 = scalar_select 0, %s8, %s6
  $region1: #{tpu_custom_call.1} parent=0
    #allocation3 [shape = 'u8[32768]{0}', space=vmem, size = 0x8000, scoped, tag = 'output window, operand 0']
    #allocation4 [shape = 's32[2]{0}', space=sflag, size = 0x8, scoped, tag = 'scoped memory for tpu_custom_call.1']
    #allocation5 [shape = 'u8[2048]{0}', space=vmem, size = 0x800, scoped, tag = 'output window, operand 1']
    #allocation6 [shape = 's32[2]{0}', space=sflag, size = 0x8, scoped, tag = 'scoped memory for tpu_custom_call.1']
    %10 = vsyncpa [#allocation4], 0
    %s11 = scalar_lea.sflag [#allocation4], 1
    %12 = vsyncpa %s11, 0
    %13 = vsyncpa [#allocation6], 0
    %s14 = scalar_lea.sflag [#allocation6], 1
    %15 = vsyncpa %s14, 0
    loop: start=0, step=1, limit=4
    $region2: #{tpu_custom_call.1} parent=1 // loop_pre_header
      _
    $region3: #{tpu_custom_call.1} parent=1 // loop_header
      %s17 = sphi 0, %s21
      %p18 = scmp.ge.s32.totalorder %s17, 4
      %s24 = sphi 0, %s36
      %s25 = sphi 0, %s32
      %s26 = sphi 0, %s24
      %s27 = sphi 0, %s25
      %s28 = sphi 0, %s26
      %s29 = sphi 0, %s27
      %s41 = sphi 0, %s43
      %s44 = sphi 0, %s41
      %s45 = sphi 0, %s44
      %s61 = sphi 0, %s45
      %s73 = sphi 0, %s75
      %s76 = sphi 0, %s73
      %s77 = sphi 0, %s76
      %s93 = sphi 0, %s77
      %s97 = sphi 0, %s97
      %s99 = sphi 0, %s97
      %s100 = sphi 0, %s99
      %s114 = sphi 0, %s100
      %s122 = sphi 0, %s124
      %s125 = sphi 0, %s122
      %s126 = sphi 0, %s125
      %s142 = sphi 0, %s126
      %s150 = sphi 0, %s152
      %s153 = sphi 0, %s150
      %s154 = sphi 0, %s153
      %s170 = sphi 0, %s154
    $region4: #{tpu_custom_call.1} parent=1 // loop_header_branch
      %20 = sbr.rel (%p18) target = $region8
    $region5: #{tpu_custom_call.1} parent=1 // loop_body
      %s22 = ssub.s32 %s17, 1
      %s23 = ssub.s32 %s17, 2
      %s30 = sadd.s32 1, %s25
      %p31 = scmp.ge.s32.totalorder %s30, 1
      %s32 = scalar_select %p31, 0, %s30
      %s33 = sadd.s32 1, %s24
      %s34 = scalar_select %p31, %s33, %s24
      %p35 = scmp.ge.s32.totalorder %s34, 2
      %s36 = scalar_select %p35, 0, %s34
      %s37 = ssub.s32 %s24, %s36
      %s38 = ssub.s32 %s25, %s32
      %s39 = sor.u32 %s37, %s38
      %p40 = scmp.eq.s32.totalorder %s39, 0
      %s42 = sadd.s32 %s41, 1
      %s43 = scalar_select %p40, %s41, %s42
      %p46 = pneg %p40
      %p47 = scmp.eq.s32.totalorder %s17, 1
      %p48 = por %p46, %p47
      %p49 = scmp.ne.s32.totalorder %s41, %s44
      %p50 = scmp.eq.s32.totalorder %s17, 0
      %p51 = por %p49, %p50
      %p52 = scmp.ne.s32.totalorder %s41, %s44
      %p53 = scmp.eq.s32.totalorder %s22, 1
      %p54 = por %p52, %p53
      %p55 = scmp.ne.s32.totalorder %s44, %s45
      %p56 = scmp.eq.s32.totalorder %s22, 0
      %p57 = por %p55, %p56
      %p58 = scmp.ne.s32.totalorder %s44, %s45
      %p59 = scmp.eq.s32.totalorder %s23, 1
      %p60 = por %p58, %p59
      %p62 = scmp.ne.s32.totalorder %s45, %s61
      %p63 = scmp.eq.s32.totalorder %s23, 0
      %p64 = por %p62, %p63
      %s65 = sadd.s32 %s25, 1
      %s66 = smul.u32 %s65, 8
      %s67 = sadd.s32 %s32, 1
      %s68 = smul.u32 %s67, 8
      %s69 = ssub.s32 %s24, %s36
      %s70 = ssub.s32 %s66, %s68
      %s71 = sor.u32 %s69, %s70
      %p72 = scmp.eq.s32.totalorder %s71, 0
      %s74 = sadd.s32 %s73, 1
      %s75 = scalar_select %p72, %s73, %s74
      %p78 = pneg %p72
      %p79 = scmp.eq.s32.totalorder %s17, 1
      %p80 = por %p78, %p79
      %p81 = scmp.ne.s32.totalorder %s73, %s76
      %p82 = scmp.eq.s32.totalorder %s17, 0
      %p83 = por %p81, %p82
      %p84 = scmp.ne.s32.totalorder %s73, %s76
      %p85 = scmp.eq.s32.totalorder %s22, 1
      %p86 = por %p84, %p85
      %p87 = scmp.ne.s32.totalorder %s76, %s77
      %p88 = scmp.eq.s32.totalorder %s22, 0
      %p89 = por %p87, %p88
      %p90 = scmp.ne.s32.totalorder %s76, %s77
      %p91 = scmp.eq.s32.totalorder %s23, 1
      %p92 = por %p90, %p91
      %p94 = scmp.ne.s32.totalorder %s77, %s93
      %p95 = scmp.eq.s32.totalorder %s23, 0
      %p96 = por %p94, %p95
      %s98 = sadd.s32 %s97, 1
      %p101 = scmp.eq.s32.totalorder %s17, 1
      %p102 = scmp.ne.s32.totalorder %s97, %s99
      %p103 = scmp.eq.s32.totalorder %s17, 0
      %p104 = por %p102, %p103
      %p105 = scmp.ne.s32.totalorder %s97, %s99
      %p106 = scmp.eq.s32.totalorder %s22, 1
      %p107 = por %p105, %p106
      %p108 = scmp.ne.s32.totalorder %s99, %s100
      %p109 = scmp.eq.s32.totalorder %s22, 0
      %p110 = por %p108, %p109
      %p111 = scmp.ne.s32.totalorder %s99, %s100
      %p112 = scmp.eq.s32.totalorder %s23, 1
      %p113 = por %p111, %p112
      %p115 = scmp.ne.s32.totalorder %s100, %s114
      %p116 = scmp.eq.s32.totalorder %s23, 0
      %p117 = por %p115, %p116
      %s118 = ssub.s32 %s24, %s36
      %s119 = ssub.s32 %s25, %s32
      %s120 = sor.u32 %s118, %s119
      %p121 = scmp.eq.s32.totalorder %s120, 0
      %s123 = sadd.s32 %s122, 1
      %s124 = scalar_select %p121, %s122, %s123
      %p127 = pneg %p121
      %p128 = scmp.eq.s32.totalorder %s17, 1
      %p129 = por %p127, %p128
      %p130 = scmp.ne.s32.totalorder %s122, %s125
      %p131 = scmp.eq.s32.totalorder %s17, 0
      %p132 = por %p130, %p131
      %p133 = scmp.ne.s32.totalorder %s122, %s125
      %p134 = scmp.eq.s32.totalorder %s22, 1
      %p135 = por %p133, %p134
      %p136 = scmp.ne.s32.totalorder %s125, %s126
      %p137 = scmp.eq.s32.totalorder %s22, 0
      %p138 = por %p136, %p137
      %p139 = scmp.ne.s32.totalorder %s125, %s126
      %p140 = scmp.eq.s32.totalorder %s23, 1
      %p141 = por %p139, %p140
      %p143 = scmp.ne.s32.totalorder %s126, %s142
      %p144 = scmp.eq.s32.totalorder %s23, 0
      %p145 = por %p143, %p144
      %s146 = ssub.s32 %s24, %s36
      %s147 = ssub.s32 %s25, %s32
      %s148 = sor.u32 %s146, %s147
      %p149 = scmp.eq.s32.totalorder %s148, 0
      %s151 = sadd.s32 %s150, 1
      %s152 = scalar_select %p149, %s150, %s151
      %p155 = pneg %p149
      %p156 = scmp.eq.s32.totalorder %s17, 1
      %p157 = por %p155, %p156
      %p158 = scmp.ne.s32.totalorder %s150, %s153
      %p159 = scmp.eq.s32.totalorder %s17, 0
      %p160 = por %p158, %p159
      %p161 = scmp.ne.s32.totalorder %s150, %s153
      %p162 = scmp.eq.s32.totalorder %s22, 1
      %p163 = por %p161, %p162
      %p164 = scmp.ne.s32.totalorder %s153, %s154
      %p165 = scmp.eq.s32.totalorder %s22, 0
      %p166 = por %p164, %p165
      %p167 = scmp.ne.s32.totalorder %s153, %s154
      %p168 = scmp.eq.s32.totalorder %s23, 1
      %p169 = por %p167, %p168
      %p171 = scmp.ne.s32.totalorder %s154, %s170
      %p172 = scmp.eq.s32.totalorder %s23, 0
      %p173 = por %p171, %p172
      %p174 = scmp.le.s32.totalorder 1, %s17
      %p175 = scmp.lt.s32.totalorder %s17, 3
      %p176 = pnand %p174, %p175
      %p177 = pneg %p176
      // Predicated region
      $region9: #{tpu_custom_call.1} parent=5 // pred_check
        _
      $region10: #{tpu_custom_call.1} parent=5 // pred_check_branch
        %179 = sbr.rel (%p176) target = $region12
      $region11: #{tpu_custom_call.1} parent=5 // pred_region
        %s180 = ssub.s32 %s17, 1
        // Predicated region
        $region13: #{tpu_custom_call.1} parent=11 // pred_check
          %p181 = pneg %p110
        $region14: #{tpu_custom_call.1} parent=11 // pred_check_branch
          %183 = sbr.rel (%p181) target = $region16
        $region15: #{tpu_custom_call.1} parent=11 // pred_region
          _
        $region16: #{tpu_custom_call.1} parent=11 // pred_fallthru
          _
      $region12: #{tpu_custom_call.1} parent=5 // pred_fallthru
        _
      %p184 = scmp.lt.s32.totalorder %s17, 2
      // Predicated region
      $region17: #{tpu_custom_call.1} parent=5 // pred_check
        %p185 = pneg %p184
      $region18: #{tpu_custom_call.1} parent=5 // pred_check_branch
        %187 = sbr.rel (%p185) target = $region20
      $region19: #{tpu_custom_call.1} parent=5 // pred_region
        // Predicated region
        $region21: #{tpu_custom_call.1} parent=19 // pred_check
          %p188 = pneg %p51
        $region22: #{tpu_custom_call.1} parent=19 // pred_check_branch
          %190 = sbr.rel (%p188) target = $region24
        $region23: #{tpu_custom_call.1} parent=19 // pred_region
          %s191 = smul.u32 8, %s25
          %s192 = ssub.s32 9, %s191
          %p193 = scmp.lt.s32.totalorder %s192, 8
          %s194 = scalar_select %p193, %s192, 8
          %s195 = smul.u32 64, %s194
          %s196 = smul.u32 %s195, 2
          %p197 = scmp.lt.s32.totalorder %s24, 1
          %s198 = scalar_select %p197, %s24, 1
          %p199 = scmp.lt.s32.totalorder %s191, 8
          %s200 = scalar_select %p199, %s191, 8
          %s201 = smul.addr %s200, 2
          %s202 = smul.addr %s198, 18
          %s203 = sadd.s32 %s201, %s202
          %s204 = smul.addr %s203, 4
          %s205 = scalar_lea.vmem %s0, %s204
          %s206 = smul.u32 8, %s25
          %s207 = ssub.s32 9, %s206
          %p208 = scmp.lt.s32.totalorder %s207, 8
          %s209 = scalar_select %p208, %s207, 8
          %s210 = smul.u32 64, %s209
          %s211 = smul.u32 %s210, 2
        $region24: #{tpu_custom_call.1} parent=19 // pred_fallthru
          _
        // Predicated region
        $region25: #{tpu_custom_call.1} parent=19 // pred_check
          %p212 = pneg %p83
        $region26: #{tpu_custom_call.1} parent=19 // pred_check_branch
          %214 = sbr.rel (%p212) target = $region28
        $region27: #{tpu_custom_call.1} parent=19 // pred_region
          %s215 = sadd.s32 %s25, 1
          %s216 = smul.u32 %s215, 8
          %p217 = scmp.lt.s32.totalorder %s24, 1
          %s218 = scalar_select %p217, %s24, 1
          %p219 = scmp.lt.s32.totalorder %s216, 8
          %s220 = scalar_select %p219, %s216, 8
          %s221 = smul.addr %s220, 2
          %s222 = smul.addr %s218, 18
          %s223 = sadd.s32 %s221, %s222
          %s224 = smul.addr %s223, 4
          %s225 = scalar_lea.vmem %s1, %s224
          %s226 = sadd.s32 %s25, 1
          %s227 = smul.u32 %s226, 8
        $region28: #{tpu_custom_call.1} parent=19 // pred_fallthru
          _
      $region20: #{tpu_custom_call.1} parent=5 // pred_fallthru
        _
      %p228 = scmp.le.s32.totalorder 1, %s17
      %p229 = scmp.lt.s32.totalorder %s17, 3
      %p230 = pnand %p228, %p229
      %p231 = pneg %p230
      // Predicated region
      $region29: #{tpu_custom_call.1} parent=5 // pred_check
        _
      $region30: #{tpu_custom_call.1} parent=5 // pred_check_branch
        %233 = sbr.rel (%p230) target = $region32
      $region31: #{tpu_custom_call.1} parent=5 // pred_region
        %s234 = ssub.s32 %s17, 1
        %s235 = smul.u32 8, %s27
        %s236 = ssub.s32 9, %s235
        %p237 = scmp.lt.s32.totalorder %s236, 8
        %s238 = scalar_select %p237, %s236, 8
        %s239 = smul.u32 64, %s238
        %s240 = smul.u32 %s239, 2
        %p241 = scmp.lt.s32.totalorder %s26, 1
        %s242 = scalar_select %p241, %s26, 1
        %p243 = scmp.lt.s32.totalorder %s235, 8
        %s244 = scalar_select %p243, %s235, 8
        %s245 = smul.addr %s244, 2
        %s246 = smul.addr %s242, 18
        %s247 = sadd.s32 %s245, %s246
        %s248 = smul.addr %s247, 4
        %s249 = scalar_lea.vmem %s0, %s248
        %p250 = pneg %p57
        %p251 = pneg %p54
        %s252 = sadd.s32 %s27, 1
        %s253 = smul.u32 %s252, 8
        %p254 = scmp.lt.s32.totalorder %s26, 1
        %s255 = scalar_select %p254, %s26, 1
        %p256 = scmp.lt.s32.totalorder %s253, 8
        %s257 = scalar_select %p256, %s253, 8
        %s258 = smul.addr %s257, 2
        %s259 = smul.addr %s255, 18
        %s260 = sadd.s32 %s258, %s259
        %s261 = smul.addr %s260, 4
        %s262 = scalar_lea.vmem %s1, %s261
        %p263 = pneg %p89
        %p264 = pneg %p86
        %p265 = pneg %p110
        %p266 = pneg %p107
        %p267 = pneg %p138
        %p268 = pneg %p135
        %s269 = sand.u32 %s125, 1
        %s270 = scalar_lea.sflag [#allocation4], %s269
        %s271 = sand.u32 %s125, 1
        %s272 = smul.addr %s271, 32
        %s273 = scalar_lea.vmem [#allocation3], %s272
        %p274 = pneg %p166
        %p275 = pneg %p163
        %s276 = sand.u32 %s153, 1
        %s277 = scalar_lea.sflag [#allocation6], %s276
        %s278 = sand.u32 %s153, 1
        %s279 = smul.addr %s278, 2
        %s280 = scalar_lea.vmem [#allocation5], %s279
        %s281 = smul.u32 8, %s27
        %s282 = ssub.s32 9, %s281
        %p283 = scmp.lt.s32.totalorder %s282, 8
        %s284 = scalar_select %p283, %s282, 8
        %s285 = smul.u32 64, %s284
        %s286 = smul.u32 %s285, 2
        %p287 = scmp.lt.s32.totalorder %s26, 1
        %s288 = scalar_select %p287, %s26, 1
        %p289 = scmp.lt.s32.totalorder %s281, 8
        %s290 = scalar_select %p289, %s281, 8
        %s291 = smul.addr %s290, 2
        %s292 = smul.addr %s288, 18
        %s293 = sadd.s32 %s291, %s292
        %s294 = smul.addr %s293, 4
        %s295 = scalar_lea.vmem %s0, %s294
        %s296 = smul.u32 8, %s27
        %s297 = ssub.s32 9, %s296
        %p298 = scmp.lt.s32.totalorder %s297, 8
        %s299 = scalar_select %p298, %s297, 8
        %s300 = smul.u32 64, %s299
        %s301 = smul.u32 %s300, 2
        %s302 = sadd.s32 %s27, 1
        %s303 = smul.u32 %s302, 8
        %p304 = scmp.lt.s32.totalorder %s26, 1
        %s305 = scalar_select %p304, %s26, 1
        %p306 = scmp.lt.s32.totalorder %s303, 8
        %s307 = scalar_select %p306, %s303, 8
        %s308 = smul.addr %s307, 2
        %s309 = smul.addr %s305, 18
        %s310 = sadd.s32 %s308, %s309
        %s311 = smul.addr %s310, 4
        %s312 = scalar_lea.vmem %s1, %s311
        %s313 = sadd.s32 %s27, 1
        %s314 = smul.u32 %s313, 8
        %s315 = smul.u32 8, %s27
        %v317 = vld [vmem:[%s295] sm:$0xf]
        %v318 = vld [vmem:[%s295 + $0x4] sm:$0x1]
        %v319 = vld [vmem:[%s295 + $0x8] sm:$0xf]
        %v320 = vld [vmem:[%s295 + $0xc] sm:$0x1]
        %v321 = vld [vmem:[%s295 + $0x10] sm:$0xf]
        %v322 = vld [vmem:[%s295 + $0x14] sm:$0x1]
        %v323 = vld [vmem:[%s295 + $0x18] sm:$0xf]
        %v324 = vld [vmem:[%s295 + $0x1c] sm:$0x1]
        %v325 = vld [vmem:[%s295 + $0x20] sm:$0xf]
        %v326 = vld [vmem:[%s295 + $0x24] sm:$0x1]
        %v327 = vld [vmem:[%s295 + $0x28] sm:$0xf]
        %v328 = vld [vmem:[%s295 + $0x2c] sm:$0x1]
        %v329 = vld [vmem:[%s295 + $0x30] sm:$0xf]
        %v330 = vld [vmem:[%s295 + $0x34] sm:$0x1]
        %v331 = vld [vmem:[%s295 + $0x38] sm:$0xf]
        %v332 = vld [vmem:[%s295 + $0x3c] sm:$0x1]
        %v333 = vld [vmem:[%s312] sm:$0xf]
        %v334 = vld [vmem:[%s312 + $0x4] sm:$0x1]
        %v335 = vld [vmem:[%s2] sm:$0xf]
        %v336 = vld [vmem:[%s2 + $0x4] sm:$0xf]
        %v337 = vld [vmem:[%s2 + $0x8] sm:$0xf]
        %v338 = vld [vmem:[%s2 + $0xc] sm:$0xf]
        %v339 = vld [vmem:[%s2 + $0x10] sm:$0xf]
        %v340 = vld [vmem:[%s2 + $0x14] sm:$0xf]
        %v341 = vld [vmem:[%s2 + $0x18] sm:$0xf]
        %v342 = vld [vmem:[%s2 + $0x1c] sm:$0xf]
        %vm343 = vsmask.f32 3328
        %vm344 = vsmask.f32 7440
        %vm345 = vmor %vm343, %vm344
        %v347 = vshrl.u32 %v317, 16
        %v349 = vrot.slane %v347, 4
        %v350 = vshll.u32 %v317, 16
        %v352 = vrot.slane %v350, 5
        %v353 = vor.u32 %v349, %v352
        %v354 = vrot.slane %v353, 4
        %v356 = vshll.u32 %v318, 16
        %v358 = vrot.slane %v356, 5
        %v359 = vsel %vm345, %v354, %v358
        %v361 = vshrl.u32 %v319, 16
        %v363 = vrot.slane %v361, 4
        %v364 = vshll.u32 %v319, 16
        %v366 = vrot.slane %v364, 5
        %v367 = vor.u32 %v363, %v366
        %v368 = vrot.slane %v367, 4
        %v370 = vshll.u32 %v320, 16
        %v372 = vrot.slane %v370, 5
        %v373 = vsel %vm345, %v368, %v372
        %v375 = vshrl.u32 %v321, 16
        %v377 = vrot.slane %v375, 4
        %v378 = vshll.u32 %v321, 16
        %v380 = vrot.slane %v378, 5
        %v381 = vor.u32 %v377, %v380
        %v382 = vrot.slane %v381, 4
        %v384 = vshll.u32 %v322, 16
        %v386 = vrot.slane %v384, 5
        %v387 = vsel %vm345, %v382, %v386
        %v389 = vshrl.u32 %v323, 16
        %v391 = vrot.slane %v389, 4
        %v392 = vshll.u32 %v323, 16
        %v394 = vrot.slane %v392, 5
        %v395 = vor.u32 %v391, %v394
        %v396 = vrot.slane %v395, 4
        %v398 = vshll.u32 %v324, 16
        %v400 = vrot.slane %v398, 5
        %v401 = vsel %vm345, %v396, %v400
        %v403 = vshrl.u32 %v325, 16
        %v405 = vrot.slane %v403, 4
        %v406 = vshll.u32 %v325, 16
        %v408 = vrot.slane %v406, 5
        %v409 = vor.u32 %v405, %v408
        %v410 = vrot.slane %v409, 4
        %v412 = vshll.u32 %v326, 16
        %v414 = vrot.slane %v412, 5
        %v415 = vsel %vm345, %v410, %v414
        %v417 = vshrl.u32 %v327, 16
        %v419 = vrot.slane %v417, 4
        %v420 = vshll.u32 %v327, 16
        %v422 = vrot.slane %v420, 5
        %v423 = vor.u32 %v419, %v422
        %v424 = vrot.slane %v423, 4
        %v426 = vshll.u32 %v328, 16
        %v428 = vrot.slane %v426, 5
        %v429 = vsel %vm345, %v424, %v428
        %v431 = vshrl.u32 %v329, 16
        %v433 = vrot.slane %v431, 4
        %v434 = vshll.u32 %v329, 16
        %v436 = vrot.slane %v434, 5
        %v437 = vor.u32 %v433, %v436
        %v438 = vrot.slane %v437, 4
        %v440 = vshll.u32 %v330, 16
        %v442 = vrot.slane %v440, 5
        %v443 = vsel %vm345, %v438, %v442
        %v445 = vshrl.u32 %v331, 16
        %v447 = vrot.slane %v445, 4
        %v448 = vshll.u32 %v331, 16
        %v450 = vrot.slane %v448, 5
        %v451 = vor.u32 %v447, %v450
        %v452 = vrot.slane %v451, 4
        %v454 = vshll.u32 %v332, 16
        %v456 = vrot.slane %v454, 5
        %v457 = vsel %vm345, %v452, %v456
        %v458 = vunpack.c.l.b16 %v359
        %v459 = vunpack.c.l.b16 %v373
        %v460 = vunpack.c.l.b16 %v387
        %v461 = vunpack.c.l.b16 %v401
        %v462 = vunpack.c.l.b16 %v415
        %v463 = vunpack.c.l.b16 %v429
        %v464 = vunpack.c.l.b16 %v443
        %v465 = vunpack.c.l.b16 %v457
        %v466 = vpack.c.b16 %v459, %v458
        %v467 = vpack.c.b16 %v461, %v460
        %v468 = vpack.c.b16 %v463, %v462
        %v469 = vpack.c.b16 %v465, %v464
        %v472 = vunpack.c.l.b16 %v337
        %v473 = vunpack.c.l.b16 %v338
        %v474 = vpack.c.b16 %v473, %v472
        %vm476 = vcmask 130048
        %v478 = vsel %vm476, %v466, 0
        %v481 = vsel %vm476, %v467, 0
        %v484 = vsel %vm476, %v468, 0
        %v487 = vsel %vm476, %v469, 0
        %489 = vmatprep.subr.bf16.mxu0 0
        %490 = vmatpush1.bf16.msra.mxu0 %v474
        %491 = vmatprep.subr.bf16.mxu0 0
        %492 = vmatpush1.bf16.msra.mxu0 0
        %493 = vmatprep.subr.bf16.mxu0 0
        %494 = vmatpush1.bf16.msra.mxu0 0
        %495 = vmatprep.subr.bf16.mxu0 0
        %496 = vmatpush1.bf16.msra.mxu0 0
        %497 = vmatprep.subr.bf16.mxu0 0
        %498 = vmatpush1.bf16.msra.mxu0 0
        %499 = vmatprep.subr.bf16.mxu0 0
        %500 = vmatpush1.bf16.msra.mxu0 0
        %501 = vmatprep.subr.bf16.mxu0 0
        %502 = vmatpush1.bf16.msra.mxu0 0
        %503 = vmatprep.subr.bf16.mxu0 0
        %504 = vmatpush1.bf16.msra.mxu0 0
        %505 = vmatprep.subr.bf16.mxu0 0
        %506 = vmatpush1.bf16.msra.mxu0 0
        %507 = vmatprep.subr.bf16.mxu0 0
        %508 = vmatpush1.bf16.msra.mxu0 0
        %509 = vmatprep.subr.bf16.mxu0 0
        %510 = vmatpush1.bf16.msra.mxu0 0
        %511 = vmatprep.subr.bf16.mxu0 0
        %512 = vmatpush1.bf16.msra.mxu0 0
        %513 = vmatprep.subr.bf16.mxu0 0
        %514 = vmatpush1.bf16.msra.mxu0 0
        %515 = vmatprep.subr.bf16.mxu0 0
        %516 = vmatpush1.bf16.msra.mxu0 0
        %517 = vmatprep.subr.bf16.mxu0 0
        %518 = vmatpush1.bf16.msra.mxu0 0
        %519 = vmatprep.subr.bf16.mxu0 0
        %520 = vmatpush1.bf16.msra.mxu0 0
        %521 = vmatprep.mubr.bf16.mxu0 0
        %522 = vmatmul.mubr.bf16.gmra.mrb[0].mxu0 %v478
        %v523 = vpop.f32.mrb[0].mxu0
        %v524 = vadd.f32 0.0, %v523
        %v525 = vpop.f32.mrb[0].mxu0
        %v526 = vpop.f32.mrb[0].mxu0
        %v527 = vadd.f32 0.0, %v526
        %v528 = vpop.f32.mrb[0].mxu0
        %529 = vmatprep.mubr.bf16.mxu0 0
        %530 = vmatmul.mubr.bf16.gmra.mrb[0].mxu0 %v481
        %v531 = vpop.f32.mrb[0].mxu0
        %v532 = vadd.f32 0.0, %v531
        %v533 = vpop.f32.mrb[0].mxu0
        %v534 = vpop.f32.mrb[0].mxu0
        %v535 = vadd.f32 0.0, %v534
        %v536 = vpop.f32.mrb[0].mxu0
        %537 = vmatprep.mubr.bf16.mxu0 0
        %538 = vmatmul.mubr.bf16.gmra.mrb[0].mxu0 %v484
        %v539 = vpop.f32.mrb[0].mxu0
        %v540 = vadd.f32 0.0, %v539
        %v541 = vpop.f32.mrb[0].mxu0
        %v542 = vpop.f32.mrb[0].mxu0
        %v543 = vadd.f32 0.0, %v542
        %v544 = vpop.f32.mrb[0].mxu0
        %545 = vmatprep.mubr.bf16.mxu0 0
        %546 = vmatmul.mubr.bf16.gmra.mrb[0].mxu0 %v487
        %v547 = vpop.f32.mrb[0].mxu0
        %v548 = vadd.f32 0.0, %v547
        %v549 = vpop.f32.mrb[0].mxu0
        %v550 = vpop.f32.mrb[0].mxu0
        %v551 = vadd.f32 0.0, %v550
        %v552 = vpop.f32.mrb[0].mxu0
        %553 = vdwg.mxu0
        %v562 = vunpack.c.l.b16 %v317
        %v563 = vunpack.c.l.b16 %v319
        %v564 = vunpack.c.l.b16 %v321
        %v565 = vunpack.c.l.b16 %v323
        %v566 = vunpack.c.l.b16 %v325
        %v567 = vunpack.c.l.b16 %v327
        %v568 = vunpack.c.l.b16 %v329
        %v569 = vunpack.c.l.b16 %v331
        %v570 = vpack.c.b16 %v563, %v562
        %v571 = vpack.c.b16 %v565, %v564
        %v572 = vpack.c.b16 %v567, %v566
        %v573 = vpack.c.b16 %v569, %v568
        %v576 = vunpack.c.l.b16 %v335
        %v577 = vunpack.c.l.b16 %v336
        %v578 = vpack.c.b16 %v577, %v576
        %v581 = vsel %vm476, %v570, 0
        %v584 = vsel %vm476, %v571, 0
        %v587 = vsel %vm476, %v572, 0
        %v590 = vsel %vm476, %v573, 0
        %592 = vmatprep.subr.bf16.mxu0 0
        %593 = vmatpush1.bf16.msra.mxu0 %v578
        %594 = vmatprep.subr.bf16.mxu0 0
        %595 = vmatpush1.bf16.msra.mxu0 0
        %596 = vmatprep.subr.bf16.mxu0 0
        %597 = vmatpush1.bf16.msra.mxu0 0
        %598 = vmatprep.subr.bf16.mxu0 0
        %599 = vmatpush1.bf16.msra.mxu0 0
        %600 = vmatprep.subr.bf16.mxu0 0
        %601 = vmatpush1.bf16.msra.mxu0 0
        %602 = vmatprep.subr.bf16.mxu0 0
        %603 = vmatpush1.bf16.msra.mxu0 0
        %604 = vmatprep.subr.bf16.mxu0 0
        %605 = vmatpush1.bf16.msra.mxu0 0
        %606 = vmatprep.subr.bf16.mxu0 0
        %607 = vmatpush1.bf16.msra.mxu0 0
        %608 = vmatprep.subr.bf16.mxu0 0
        %609 = vmatpush1.bf16.msra.mxu0 0
        %610 = vmatprep.subr.bf16.mxu0 0
        %611 = vmatpush1.bf16.msra.mxu0 0
        %612 = vmatprep.subr.bf16.mxu0 0
        %613 = vmatpush1.bf16.msra.mxu0 0
        %614 = vmatprep.subr.bf16.mxu0 0
        %615 = vmatpush1.bf16.msra.mxu0 0
        %616 = vmatprep.subr.bf16.mxu0 0
        %617 = vmatpush1.bf16.msra.mxu0 0
        %618 = vmatprep.subr.bf16.mxu0 0
        %619 = vmatpush1.bf16.msra.mxu0 0
        %620 = vmatprep.subr.bf16.mxu0 0
        %621 = vmatpush1.bf16.msra.mxu0 0
        %622 = vmatprep.subr.bf16.mxu0 0
        %623 = vmatpush1.bf16.msra.mxu0 0
        %624 = vmatprep.mubr.bf16.mxu0 0
        %625 = vmatmul.mubr.bf16.gmra.mrb[0].mxu0 %v581
        %v626 = vpop.f32.mrb[0].mxu0
        %v627 = vadd.f32 %v524, %v626
        %v628 = vpop.f32.mrb[0].mxu0
        %v629 = vpop.f32.mrb[0].mxu0
        %v630 = vadd.f32 %v527, %v629
        %v631 = vpop.f32.mrb[0].mxu0
        %632 = vmatprep.mubr.bf16.mxu0 0
        %633 = vmatmul.mubr.bf16.gmra.mrb[0].mxu0 %v584
        %v634 = vpop.f32.mrb[0].mxu0
        %v635 = vadd.f32 %v532, %v634
        %v636 = vpop.f32.mrb[0].mxu0
        %v637 = vpop.f32.mrb[0].mxu0
        %v638 = vadd.f32 %v535, %v637
        %v639 = vpop.f32.mrb[0].mxu0
        %640 = vmatprep.mubr.bf16.mxu0 0
        %641 = vmatmul.mubr.bf16.gmra.mrb[0].mxu0 %v587
        %v642 = vpop.f32.mrb[0].mxu0
        %v643 = vadd.f32 %v540, %v642
        %v644 = vpop.f32.mrb[0].mxu0
        %v645 = vpop.f32.mrb[0].mxu0
        %v646 = vadd.f32 %v543, %v645
        %v647 = vpop.f32.mrb[0].mxu0
        %648 = vmatprep.mubr.bf16.mxu0 0
        %649 = vmatmul.mubr.bf16.gmra.mrb[0].mxu0 %v590
        %v650 = vpop.f32.mrb[0].mxu0
        %v651 = vadd.f32 %v548, %v650
        %v652 = vpop.f32.mrb[0].mxu0
        %v653 = vpop.f32.mrb[0].mxu0
        %v654 = vadd.f32 %v551, %v653
        %v655 = vpop.f32.mrb[0].mxu0
        %656 = vdwg.mxu0
        %vm657 = vcmask 64512
        %658 = vst.msk [vmem:[#allocation2] sm:$0xff] %vm657, %v627
        %659 = vst.msk [vmem:[#allocation2 + $0x8] sm:$0xff] %vm657, %v630
        %660 = vst.msk [vmem:[#allocation2 + $0x10] sm:$0xff] %vm657, %v635
        %661 = vst.msk [vmem:[#allocation2 + $0x18] sm:$0xff] %vm657, %v638
        %662 = vst.msk [vmem:[#allocation2 + $0x20] sm:$0xff] %vm657, %v643
        %663 = vst.msk [vmem:[#allocation2 + $0x28] sm:$0xff] %vm657, %v646
        %664 = vst.msk [vmem:[#allocation2 + $0x30] sm:$0xff] %vm657, %v651
        %665 = vst.msk [vmem:[#allocation2 + $0x38] sm:$0xff] %vm657, %v654
        %v666 = vld [vmem:[#allocation2] sm:$0xff]
        %v667 = vld [vmem:[#allocation2 + $0x8] sm:$0xff]
        %v668 = vld [vmem:[#allocation2 + $0x10] sm:$0xff]
        %v669 = vld [vmem:[#allocation2 + $0x18] sm:$0xff]
        %v670 = vld [vmem:[#allocation2 + $0x20] sm:$0xff]
        %v671 = vld [vmem:[#allocation2 + $0x28] sm:$0xff]
        %v672 = vld [vmem:[#allocation2 + $0x30] sm:$0xff]
        %v673 = vpack.c.b16 %v460, %v459
        %v674 = vpack.c.b16 %v462, %v461
        %v675 = vpack.c.b16 %v464, %v463
        %v676 = vpack.c.b16 %v465, %v465
        %v679 = vunpack.c.l.b16 %v341
        %v680 = vunpack.c.l.b16 %v342
        %v681 = vpack.c.b16 %v680, %v679
        %v684 = vsel %vm476, %v673, 0
        %v687 = vsel %vm476, %v674, 0
        %v690 = vsel %vm476, %v675, 0
        %v693 = vsel %vm476, %v676, 0
        %695 = vmatprep.subr.bf16.mxu0 0
        %696 = vmatpush1.bf16.msra.mxu0 %v681
        %697 = vmatprep.subr.bf16.mxu0 0
        %698 = vmatpush1.bf16.msra.mxu0 0
        %699 = vmatprep.subr.bf16.mxu0 0
        %700 = vmatpush1.bf16.msra.mxu0 0
        %701 = vmatprep.subr.bf16.mxu0 0
        %702 = vmatpush1.bf16.msra.mxu0 0
        %703 = vmatprep.subr.bf16.mxu0 0
        %704 = vmatpush1.bf16.msra.mxu0 0
        %705 = vmatprep.subr.bf16.mxu0 0
        %706 = vmatpush1.bf16.msra.mxu0 0
        %707 = vmatprep.subr.bf16.mxu0 0
        %708 = vmatpush1.bf16.msra.mxu0 0
        %709 = vmatprep.subr.bf16.mxu0 0
        %710 = vmatpush1.bf16.msra.mxu0 0
        %711 = vmatprep.subr.bf16.mxu0 0
        %712 = vmatpush1.bf16.msra.mxu0 0
        %713 = vmatprep.subr.bf16.mxu0 0
        %714 = vmatpush1.bf16.msra.mxu0 0
        %715 = vmatprep.subr.bf16.mxu0 0
        %716 = vmatpush1.bf16.msra.mxu0 0
        %717 = vmatprep.subr.bf16.mxu0 0
        %718 = vmatpush1.bf16.msra.mxu0 0
        %719 = vmatprep.subr.bf16.mxu0 0
        %720 = vmatpush1.bf16.msra.mxu0 0
        %721 = vmatprep.subr.bf16.mxu0 0
        %722 = vmatpush1.bf16.msra.mxu0 0
        %723 = vmatprep.subr.bf16.mxu0 0
        %724 = vmatpush1.bf16.msra.mxu0 0
        %725 = vmatprep.subr.bf16.mxu0 0
        %726 = vmatpush1.bf16.msra.mxu0 0
        %727 = vmatprep.mubr.bf16.mxu0 0
        %728 = vmatmul.mubr.bf16.gmra.mrb[0].mxu0 %v684
        %v729 = vpop.f32.mrb[0].mxu0
        %v730 = vadd.f32 0.0, %v729
        %v731 = vpop.f32.mrb[0].mxu0
        %v732 = vpop.f32.mrb[0].mxu0
        %v733 = vadd.f32 0.0, %v732
        %v734 = vpop.f32.mrb[0].mxu0
        %735 = vmatprep.mubr.bf16.mxu0 0
        %736 = vmatmul.mubr.bf16.gmra.mrb[0].mxu0 %v687
        %v737 = vpop.f32.mrb[0].mxu0
        %v738 = vadd.f32 0.0, %v737
        %v739 = vpop.f32.mrb[0].mxu0
        %v740 = vpop.f32.mrb[0].mxu0
        %v741 = vadd.f32 0.0, %v740
        %v742 = vpop.f32.mrb[0].mxu0
        %743 = vmatprep.mubr.bf16.mxu0 0
        %744 = vmatmul.mubr.bf16.gmra.mrb[0].mxu0 %v690
        %v745 = vpop.f32.mrb[0].mxu0
        %v746 = vadd.f32 0.0, %v745
        %v747 = vpop.f32.mrb[0].mxu0
        %v748 = vpop.f32.mrb[0].mxu0
        %v749 = vadd.f32 0.0, %v748
        %v750 = vpop.f32.mrb[0].mxu0
        %751 = vmatprep.mubr.bf16.mxu0 0
        %752 = vmatmul.mubr.bf16.gmra.mrb[0].mxu0 %v693
        %v753 = vpop.f32.mrb[0].mxu0
        %v754 = vadd.f32 0.0, %v753
        %v755 = vpop.f32.mrb[0].mxu0
        %v756 = vpop.f32.mrb[0].mxu0
        %v757 = vpop.f32.mrb[0].mxu0
        %758 = vdwg.mxu0
        %v759 = vpack.c.b16 %v564, %v563
        %v760 = vpack.c.b16 %v566, %v565
        %v761 = vpack.c.b16 %v568, %v567
        %v762 = vpack.c.b16 %v569, %v569
        %v765 = vunpack.c.l.b16 %v339
        %v766 = vunpack.c.l.b16 %v340
        %v767 = vpack.c.b16 %v766, %v765
        %v770 = vsel %vm476, %v759, 0
        %v773 = vsel %vm476, %v760, 0
        %v776 = vsel %vm476, %v761, 0
        %v779 = vsel %vm476, %v762, 0
        %781 = vmatprep.subr.bf16.mxu0 0
        %782 = vmatpush1.bf16.msra.mxu0 %v767
        %783 = vmatprep.subr.bf16.mxu0 0
        %784 = vmatpush1.bf16.msra.mxu0 0
        %785 = vmatprep.subr.bf16.mxu0 0
        %786 = vmatpush1.bf16.msra.mxu0 0
        %787 = vmatprep.subr.bf16.mxu0 0
        %788 = vmatpush1.bf16.msra.mxu0 0
        %789 = vmatprep.subr.bf16.mxu0 0
        %790 = vmatpush1.bf16.msra.mxu0 0
        %791 = vmatprep.subr.bf16.mxu0 0
        %792 = vmatpush1.bf16.msra.mxu0 0
        %793 = vmatprep.subr.bf16.mxu0 0
        %794 = vmatpush1.bf16.msra.mxu0 0
        %795 = vmatprep.subr.bf16.mxu0 0
        %796 = vmatpush1.bf16.msra.mxu0 0
        %797 = vmatprep.subr.bf16.mxu0 0
        %798 = vmatpush1.bf16.msra.mxu0 0
        %799 = vmatprep.subr.bf16.mxu0 0
        %800 = vmatpush1.bf16.msra.mxu0 0
        %801 = vmatprep.subr.bf16.mxu0 0
        %802 = vmatpush1.bf16.msra.mxu0 0
        %803 = vmatprep.subr.bf16.mxu0 0
        %804 = vmatpush1.bf16.msra.mxu0 0
        %805 = vmatprep.subr.bf16.mxu0 0
        %806 = vmatpush1.bf16.msra.mxu0 0
        %807 = vmatprep.subr.bf16.mxu0 0
        %808 = vmatpush1.bf16.msra.mxu0 0
        %809 = vmatprep.subr.bf16.mxu0 0
        %810 = vmatpush1.bf16.msra.mxu0 0
        %811 = vmatprep.subr.bf16.mxu0 0
        %812 = vmatpush1.bf16.msra.mxu0 0
        %813 = vmatprep.mubr.bf16.mxu0 0
        %814 = vmatmul.mubr.bf16.gmra.mrb[0].mxu0 %v770
        %v815 = vpop.f32.mrb[0].mxu0
        %v816 = vadd.f32 %v730, %v815
        %v817 = vpop.f32.mrb[0].mxu0
        %v818 = vpop.f32.mrb[0].mxu0
        %v819 = vadd.f32 %v733, %v818
        %v820 = vpop.f32.mrb[0].mxu0
        %821 = vmatprep.mubr.bf16.mxu0 0
        %822 = vmatmul.mubr.bf16.gmra.mrb[0].mxu0 %v773
        %v823 = vpop.f32.mrb[0].mxu0
        %v824 = vadd.f32 %v738, %v823
        %v825 = vpop.f32.mrb[0].mxu0
        %v826 = vpop.f32.mrb[0].mxu0
        %v827 = vadd.f32 %v741, %v826
        %v828 = vpop.f32.mrb[0].mxu0
        %829 = vmatprep.mubr.bf16.mxu0 0
        %830 = vmatmul.mubr.bf16.gmra.mrb[0].mxu0 %v776
        %v831 = vpop.f32.mrb[0].mxu0
        %v832 = vadd.f32 %v746, %v831
        %v833 = vpop.f32.mrb[0].mxu0
        %v834 = vpop.f32.mrb[0].mxu0
        %v835 = vadd.f32 %v749, %v834
        %v836 = vpop.f32.mrb[0].mxu0
        %837 = vmatprep.mubr.bf16.mxu0 0
        %838 = vmatmul.mubr.bf16.gmra.mrb[0].mxu0 %v779
        %v839 = vpop.f32.mrb[0].mxu0
        %v840 = vadd.f32 %v754, %v839
        %v841 = vpop.f32.mrb[0].mxu0
        %v842 = vpop.f32.mrb[0].mxu0
        %v843 = vpop.f32.mrb[0].mxu0
        %844 = vdwg.mxu0
        %v845 = vadd.f32 %v666, %v816
        %v846 = vadd.f32 %v667, %v819
        %v847 = vadd.f32 %v668, %v824
        %v848 = vadd.f32 %v669, %v827
        %v849 = vadd.f32 %v670, %v832
        %v850 = vadd.f32 %v671, %v835
        %v851 = vadd.f32 %v672, %v840
        %852 = vst.msk [vmem:[#allocation2] sm:$0xff] %vm657, %v845
        %853 = vst.msk [vmem:[#allocation2 + $0x8] sm:$0xff] %vm657, %v846
        %854 = vst.msk [vmem:[#allocation2 + $0x10] sm:$0xff] %vm657, %v847
        %855 = vst.msk [vmem:[#allocation2 + $0x18] sm:$0xff] %vm657, %v848
        %856 = vst.msk [vmem:[#allocation2 + $0x20] sm:$0xff] %vm657, %v849
        %857 = vst.msk [vmem:[#allocation2 + $0x28] sm:$0xff] %vm657, %v850
        %858 = vst.msk [vmem:[#allocation2 + $0x30] sm:$0xff] %vm657, %v851
        %v859 = vld [vmem:[#allocation2 + $0x38] sm:$0xff]
        %v862 = vunpack.c.l.b16 %v333
        %v863 = vunpack.c.l.b16 %v334
        %v864 = vpack.c.b16 %v863, %v862
        %v866 = vshrl.u32 %v864, 16
        %v868 = vshll.u32 %v864, 16
        %v870 = vrot.slane %v868, 1
        %v871 = vor.u32 %v866, %v870
        %v873 = vsel %vm476, %v871, 0
        %875 = vmatprep.subr.bf16.mxu0 0
        %876 = vmatpush1.bf16.msra.mxu0 %v681
        %877 = vmatprep.subr.bf16.mxu0 0
        %878 = vmatpush1.bf16.msra.mxu0 0
        %879 = vmatprep.subr.bf16.mxu0 0
        %880 = vmatpush1.bf16.msra.mxu0 0
        %881 = vmatprep.subr.bf16.mxu0 0
        %882 = vmatpush1.bf16.msra.mxu0 0
        %883 = vmatprep.subr.bf16.mxu0 0
        %884 = vmatpush1.bf16.msra.mxu0 0
        %885 = vmatprep.subr.bf16.mxu0 0
        %886 = vmatpush1.bf16.msra.mxu0 0
        %887 = vmatprep.subr.bf16.mxu0 0
        %888 = vmatpush1.bf16.msra.mxu0 0
        %889 = vmatprep.subr.bf16.mxu0 0
        %890 = vmatpush1.bf16.msra.mxu0 0
        %891 = vmatprep.subr.bf16.mxu0 0
        %892 = vmatpush1.bf16.msra.mxu0 0
        %893 = vmatprep.subr.bf16.mxu0 0
        %894 = vmatpush1.bf16.msra.mxu0 0
        %895 = vmatprep.subr.bf16.mxu0 0
        %896 = vmatpush1.bf16.msra.mxu0 0
        %897 = vmatprep.subr.bf16.mxu0 0
        %898 = vmatpush1.bf16.msra.mxu0 0
        %899 = vmatprep.subr.bf16.mxu0 0
        %900 = vmatpush1.bf16.msra.mxu0 0
        %901 = vmatprep.subr.bf16.mxu0 0
        %902 = vmatpush1.bf16.msra.mxu0 0
        %903 = vmatprep.subr.bf16.mxu0 0
        %904 = vmatpush1.bf16.msra.mxu0 0
        %905 = vmatprep.subr.bf16.mxu0 0
        %906 = vmatpush1.bf16.msra.mxu0 0
        %907 = vmatprep.mubr.bf16.mxu0 0
        %908 = vmatmul.mubr.bf16.gmra.mrb[0].mxu0 %v873
        %v909 = vpop.f32.mrb[0].mxu0
        %v910 = vadd.f32 0.0, %v909
        %v911 = vpop.f32.mrb[0].mxu0
        %v912 = vpop.f32.mrb[0].mxu0
        %v913 = vpop.f32.mrb[0].mxu0
        %914 = vdwg.mxu0
        %v916 = vsel %vm476, %v333, 0
        %918 = vmatprep.subr.bf16.mxu0 0
        %919 = vmatpush1.bf16.msra.mxu0 %v767
        %920 = vmatprep.subr.bf16.mxu0 0
        %921 = vmatpush1.bf16.msra.mxu0 0
        %922 = vmatprep.subr.bf16.mxu0 0
        %923 = vmatpush1.bf16.msra.mxu0 0
        %924 = vmatprep.subr.bf16.mxu0 0
        %925 = vmatpush1.bf16.msra.mxu0 0
        %926 = vmatprep.subr.bf16.mxu0 0
        %927 = vmatpush1.bf16.msra.mxu0 0
        %928 = vmatprep.subr.bf16.mxu0 0
        %929 = vmatpush1.bf16.msra.mxu0 0
        %930 = vmatprep.subr.bf16.mxu0 0
        %931 = vmatpush1.bf16.msra.mxu0 0
        %932 = vmatprep.subr.bf16.mxu0 0
        %933 = vmatpush1.bf16.msra.mxu0 0
        %934 = vmatprep.subr.bf16.mxu0 0
        %935 = vmatpush1.bf16.msra.mxu0 0
        %936 = vmatprep.subr.bf16.mxu0 0
        %937 = vmatpush1.bf16.msra.mxu0 0
        %938 = vmatprep.subr.bf16.mxu0 0
        %939 = vmatpush1.bf16.msra.mxu0 0
        %940 = vmatprep.subr.bf16.mxu0 0
        %941 = vmatpush1.bf16.msra.mxu0 0
        %942 = vmatprep.subr.bf16.mxu0 0
        %943 = vmatpush1.bf16.msra.mxu0 0
        %944 = vmatprep.subr.bf16.mxu0 0
        %945 = vmatpush1.bf16.msra.mxu0 0
        %946 = vmatprep.subr.bf16.mxu0 0
        %947 = vmatpush1.bf16.msra.mxu0 0
        %948 = vmatprep.subr.bf16.mxu0 0
        %949 = vmatpush1.bf16.msra.mxu0 0
        %950 = vmatprep.mubr.bf16.mxu0 0
        %951 = vmatmul.mubr.bf16.gmra.mrb[0].mxu0 %v916
        %v952 = vpop.f32.mrb[0].mxu0
        %v953 = vadd.f32 %v910, %v952
        %v954 = vpop.f32.mrb[0].mxu0
        %v955 = vpop.f32.mrb[0].mxu0
        %v956 = vpop.f32.mrb[0].mxu0
        %957 = vdwg.mxu0
        %v958 = vadd.f32 %v859, %v953
        %959 = vst.msk [vmem:[#allocation2 + $0x38] sm:$0xff] %vm657, %v958
        %v960 = vld [vmem:[#allocation2] sm:$0xff]
        %v961 = vld [vmem:[#allocation2 + $0x8] sm:$0xff]
        %v962 = vld [vmem:[#allocation2 + $0x10] sm:$0xff]
        %v963 = vld [vmem:[#allocation2 + $0x18] sm:$0xff]
        %v964 = vld [vmem:[#allocation2 + $0x20] sm:$0xff]
        %v965 = vld [vmem:[#allocation2 + $0x28] sm:$0xff]
        %v966 = vld [vmem:[#allocation2 + $0x30] sm:$0xff]
        %v967 = vld [vmem:[#allocation2 + $0x38] sm:$0xff]
        %v968 = vsel %vm657, %v960, 0.0
        %v969 = vsel %vm657, %v961, 0.0
        %v970 = vadd.f32 %v968, %v969
        %v971 = vsel %vm657, %v962, 0.0
        %v972 = vadd.f32 %v970, %v971
        %v973 = vsel %vm657, %v963, 0.0
        %v974 = vadd.f32 %v972, %v973
        %v975 = vsel %vm657, %v964, 0.0
        %v976 = vadd.f32 %v974, %v975
        %v977 = vsel %vm657, %v965, 0.0
        %v978 = vadd.f32 %v976, %v977
        %v979 = vsel %vm657, %v966, 0.0
        %v980 = vadd.f32 %v978, %v979
        %v981 = vsel %vm657, %v967, 0.0
        %v982 = vadd.f32 %v980, %v981
        %v983 = vrot.slane %v982, 4
        %v984 = vadd.f32 %v982, %v983
        %v985 = vrot.slane %v984, 2
        %v986 = vadd.f32 %v984, %v985
        %v987 = vrot.slane %v986, 1
        %v988 = vadd.f32 %v986, %v987
        %v989 = vmul.f32 %v960, %v960
        %v990 = vmul.f32 %v961, %v961
        %v991 = vmul.f32 %v962, %v962
        %v992 = vmul.f32 %v963, %v963
        %v993 = vmul.f32 %v964, %v964
        %v994 = vmul.f32 %v965, %v965
        %v995 = vmul.f32 %v966, %v966
        %v996 = vmul.f32 %v967, %v967
        %v997 = vsel %vm657, %v989, 0.0
        %v998 = vsel %vm657, %v990, 0.0
        %v999 = vadd.f32 %v997, %v998
        %v1000 = vsel %vm657, %v991, 0.0
        %v1001 = vadd.f32 %v999, %v1000
        %v1002 = vsel %vm657, %v992, 0.0
        %v1003 = vadd.f32 %v1001, %v1002
        %v1004 = vsel %vm657, %v993, 0.0
        %v1005 = vadd.f32 %v1003, %v1004
        %v1006 = vsel %vm657, %v994, 0.0
        %v1007 = vadd.f32 %v1005, %v1006
        %v1008 = vsel %vm657, %v995, 0.0
        %v1009 = vadd.f32 %v1007, %v1008
        %v1010 = vsel %vm657, %v996, 0.0
        %v1011 = vadd.f32 %v1009, %v1010
        %v1012 = vrot.slane %v1011, 4
        %v1013 = vadd.f32 %v1011, %v1012
        %v1014 = vrot.slane %v1013, 2
        %v1015 = vadd.f32 %v1013, %v1014
        %v1016 = vrot.slane %v1015, 1
        %v1017 = vadd.f32 %v1015, %v1016
        %vm1018 = vcmask 1040384
        %v1019 = vsel %vm1018, %v988, %v1017
        %vm1020 = vcmask 58368
        %1021 = vst.msk [vmem:[%s280] sm:$0x3] %vm1020, %v1019
        %v1022 = vpack.c.bf16 %v960, %v960
        %v1023 = vpack.c.bf16 %v961, %v961
        %v1024 = vpack.c.bf16 %v962, %v962
        %v1025 = vpack.c.bf16 %v963, %v963
        %v1026 = vpack.c.bf16 %v964, %v964
        %v1027 = vpack.c.bf16 %v965, %v965
        %v1028 = vpack.c.bf16 %v966, %v966
        %v1029 = vpack.c.bf16 %v967, %v967
        %vm1030 = vcmask 60416
        %1031 = vst.msk [vmem:[%s273] sm:$0xf] %vm1030, %v1022
        %1032 = vst.msk [vmem:[%s273 + $0x4] sm:$0xf] %vm1030, %v1023
        %1033 = vst.msk [vmem:[%s273 + $0x8] sm:$0xf] %vm1030, %v1024
        %1034 = vst.msk [vmem:[%s273 + $0xc] sm:$0xf] %vm1030, %v1025
        %1035 = vst.msk [vmem:[%s273 + $0x10] sm:$0xf] %vm1030, %v1026
        %1036 = vst.msk [vmem:[%s273 + $0x14] sm:$0xf] %vm1030, %v1027
        %1037 = vst.msk [vmem:[%s273 + $0x18] sm:$0xf] %vm1030, %v1028
        %1038 = vst.msk [vmem:[%s273 + $0x1c] sm:$0xf] %vm1030, %v1029
        %s1039 = sand.u32 %s125, 1
        %s1040 = scalar_lea.sflag [#allocation4], %s1039
        %s1041 = sand.u32 %s125, 1
        %s1042 = smul.addr %s1041, 32
        %s1043 = scalar_lea.vmem [#allocation3], %s1042
        %s1044 = sand.u32 %s153, 1
        %s1045 = scalar_lea.sflag [#allocation6], %s1044
        %s1046 = sand.u32 %s153, 1
        %s1047 = smul.addr %s1046, 2
        %s1048 = scalar_lea.vmem [#allocation5], %s1047
        // Predicated region
        $region33: #{tpu_custom_call.1} parent=31 // pred_check
          %p1049 = pneg %p135
        $region34: #{tpu_custom_call.1} parent=31 // pred_check_branch
          %1051 = sbr.rel (%p1049) target = $region36
        $region35: #{tpu_custom_call.1} parent=31 // pred_region
          %s1052 = smul.u32 8, %s27
          %s1054 = ssub.s32 512, 512
          %1055 = vsyncadd %s1040, %s1054
          %s1056 = smul.addr %s26, 8
          %s1057 = sadd.s32 %s1052, %s1056
          %s1058 = smul.addr %s1057, 64
          %s1059 = scalar_lea.hbm %s3, %s1058
          %s1060 = sshll.u32 %s1043, 4
          %s1061 = int_to_ptr.vmem [resolvable:$true] %s1060
          %1066 = dma.vmem_to_hbm [thread:$0]  %s1061, 512, %s1059, %s1040, 64, 64, 4
        $region36: #{tpu_custom_call.1} parent=31 // pred_fallthru
          _
        // Predicated region
        $region37: #{tpu_custom_call.1} parent=31 // pred_check
          %p1067 = pneg %p163
        $region38: #{tpu_custom_call.1} parent=31 // pred_check_branch
          %1069 = sbr.rel (%p1067) target = $region40
        $region39: #{tpu_custom_call.1} parent=31 // pred_region
          %s1071 = ssub.s32 32, 32
          %1072 = vsyncadd %s1045, %s1071
          %s1073 = sadd.s32 %s27, %s26
          %s1074 = smul.addr %s1073, 32
          %s1075 = scalar_lea.hbm %s4, %s1074
          %s1077 = sshll.u32 %s1048, 4
          %s1078 = int_to_ptr.vmem [resolvable:$true] %s1077
          %1080 = dma.vmem_to_hbm [thread:$0]  %s1078, 32, %s1075, %s1045
        $region40: #{tpu_custom_call.1} parent=31 // pred_fallthru
          _
      $region32: #{tpu_custom_call.1} parent=5 // pred_fallthru
        _
      %p1081 = scmp.le.s32.totalorder 2, %s17
      // Predicated region
      $region41: #{tpu_custom_call.1} parent=5 // pred_check
        %p1082 = pneg %p1081
      $region42: #{tpu_custom_call.1} parent=5 // pred_check_branch
        %1084 = sbr.rel (%p1082) target = $region44
      $region43: #{tpu_custom_call.1} parent=5 // pred_region
        %s1085 = ssub.s32 %s17, 2
        // Predicated region
        $region45: #{tpu_custom_call.1} parent=43 // pred_check
          %p1086 = pneg %p141
        $region46: #{tpu_custom_call.1} parent=43 // pred_check_branch
          %1088 = sbr.rel (%p1086) target = $region48
        $region47: #{tpu_custom_call.1} parent=43 // pred_region
          %s1089 = sand.u32 %s126, 1
          %s1090 = scalar_lea.sflag [#allocation4], %s1089
          %s1091 = sand.u32 %s126, 1
          %s1092 = smul.addr %s1091, 32
          %s1093 = scalar_lea.vmem [#allocation3], %s1092
          %1094 = dma.done %s1090, 512
        $region48: #{tpu_custom_call.1} parent=43 // pred_fallthru
          _
        // Predicated region
        $region49: #{tpu_custom_call.1} parent=43 // pred_check
          %p1095 = pneg %p169
        $region50: #{tpu_custom_call.1} parent=43 // pred_check_branch
          %1097 = sbr.rel (%p1095) target = $region52
        $region51: #{tpu_custom_call.1} parent=43 // pred_region
          %s1098 = sand.u32 %s154, 1
          %s1099 = scalar_lea.sflag [#allocation6], %s1098
          %s1100 = sand.u32 %s154, 1
          %s1101 = smul.addr %s1100, 2
          %s1102 = scalar_lea.vmem [#allocation5], %s1101
          %1103 = dma.done %s1099, 32
        $region52: #{tpu_custom_call.1} parent=43 // pred_fallthru
          _
      $region44: #{tpu_custom_call.1} parent=5 // pred_fallthru
        _
    $region6: #{tpu_custom_call.1} parent=1 // loop_footer
      %s21 = sadd.s32 1, %s17
    $region7: #{tpu_custom_call.1} parent=1 // loop_footer_branch
      %16 = sbr.rel target = $region3
    $region8: #{tpu_custom_call.1} parent=1 // loop_exit
      _
    %1104 = vsyncpa [#allocation4], 1
    %s1105 = scalar_lea.sflag [#allocation4], 1
    %1106 = vsyncpa %s1105, 1
    %1107 = vsyncpa [#allocation6], 1
    %s1108 = scalar_lea.sflag [#allocation6], 1
    %1109 = vsyncpa %s1108, 1

</llo_original>
